<compile_context>
chip_gen: v7x
topology: tpu7x:2x2x1
jax: 0.10.0
libtpu: 0.0.40
codegen_flags: <defaults>
</compile_context>

<pallas_src>
import jax
import jax.numpy as jnp
from jax.experimental import pallas as pl
from jax.experimental.pallas import tpu as pltpu

INPUT_DIM = 30
LATENT_DIM = 20
NUM_CLASSES = 5
HIDDEN = 128

# ---- packed weight-slab layout (rows 8-aligned, lane offsets 0 / 128) ----
W_COLS = 2 * HIDDEN                  # 256 lanes
W1_R0 = 0                            # fc1              rows [  0,  30)  cols [0,128)
WMLV_R0 = 32                         # fc2_mean|logvar  rows [ 32, 160)  cols [0, 40)
WDC_R0 = 160                         # fc3 | cnn.fc1    rows [160, 180)  cols [0,256)
WOUT_R0 = 184                        # blkdiag(fc4,fc2) rows [184, 440)  cols [0, 35)
W_ROWS = WOUT_R0 + 2 * HIDDEN        # 440

HEADS = INPUT_DIM + NUM_CLASSES      # 35 (x_rec | logits)
MLV = 2 * LATENT_DIM                 # 40 (mean | logvar)
OUT_COLS = 128                       # lane-dense output slab width

# output slab layout: [ x_rec | logits | mean | logvar | zero-pad ]
XR_C0 = 0
LOGITS_C0 = INPUT_DIM                # 30
MEAN_C0 = HEADS                      # 35
LOGVAR_C0 = HEADS + LATENT_DIM       # 55


def vae_cnn_kernel(x_ref, eps_ref, w_ref, b_ref, out_ref):
    x = x_ref[...]                   # (B, 30)
    eps = eps_ref[...]               # (B, 20)
    B = x.shape[0]

    # ---- static views into the packed slabs (zero runtime cost) ----
    w1 = w_ref[W1_R0:W1_R0 + INPUT_DIM, 0:HIDDEN]            # (30, 128)
    wmlv = w_ref[WMLV_R0:WMLV_R0 + HIDDEN, 0:MLV]            # (128, 40)
    wdc = w_ref[WDC_R0:WDC_R0 + LATENT_DIM, 0:2 * HIDDEN]    # (20, 256)
    wout = w_ref[WOUT_R0:WOUT_R0 + 2 * HIDDEN, 0:HEADS]      # (256, 35)

    b1 = b_ref[0:1, 0:HIDDEN]                                # (1, 128)
    bmlv = b_ref[1:2, 0:MLV]                                 # (1, 40)
    bdc = b_ref[2:3, 0:2 * HIDDEN]                           # (1, 256)
    bout = b_ref[3:4, 0:HEADS]                               # (1, 35)

    # ---- VAE encode: h = relu(x @ W1 + b1) ----
    h = jnp.maximum(jnp.dot(x, w1, preferred_element_type=jnp.float32) + b1, 0.0)

    # fc2_mean and fc2_logvar fused into one matmul
    mlv = jnp.dot(h, wmlv, preferred_element_type=jnp.float32) + bmlv  # (B, 40)
    mean = mlv[:, 0:LATENT_DIM]
    logvar = mlv[:, LATENT_DIM:MLV]

    # ---- reparameterize: z = mean + eps * exp(0.5 * logvar) ----
    z = mean + eps * jnp.exp(0.5 * logvar)

    # ---- decode hidden + classifier hidden fused: relu(z @ [W3 | Wc1] + [b3 | bc1]) ----
    hdc = jnp.maximum(jnp.dot(z, wdc, preferred_element_type=jnp.float32) + bdc, 0.0)  # (B, 256)

    # ---- output heads, block-diagonally fused: [hd | hc] @ blkdiag(W4, Wc2) ----
    heads = jnp.dot(hdc, wout, preferred_element_type=jnp.float32) + bout  # (B, 35)
    lane = jax.lax.broadcasted_iota(jnp.int32, heads.shape, 1)
    # sigmoid applies only to the reconstruction columns; logits pass through.
    heads = jnp.where(lane < INPUT_DIM, jax.nn.sigmoid(heads), heads)

    # ---- single lane-dense output slab: [heads | mean|logvar | pad] -> (B, 128) ----
    pad = jnp.zeros((B, OUT_COLS - (HEADS + MLV)), jnp.float32)
    out_ref[...] = jnp.concatenate([heads, mlv, pad], axis=-1)


def vae_cnn_forward(x, eps, w_slab, b_slab):
    B = x.shape[0]
    vmem = pl.BlockSpec(memory_space=pltpu.MemorySpace.VMEM)
    out = pl.pallas_call(
        vae_cnn_kernel,
        out_shape=jax.ShapeDtypeStruct((B, OUT_COLS), jnp.float32),
        in_specs=[vmem] * 4,
        out_specs=vmem,
    )(x, eps, w_slab, b_slab)
    x_rec = out[:, XR_C0:XR_C0 + INPUT_DIM]
    logits = out[:, LOGITS_C0:LOGITS_C0 + NUM_CLASSES]
    mean = out[:, MEAN_C0:MEAN_C0 + LATENT_DIM]
    logvar = out[:, LOGVAR_C0:LOGVAR_C0 + LATENT_DIM]
    return x_rec, mean, logvar, logits
    # TODO(synk): when batch grows, grid over B with dimension_semantics=("parallel",)
    # (v7x dual-TC) and cast matmul operands to bf16 on v6e/v7x.


def init_params(key):
    """Deterministic synthetic parameters. Weights are [in, out], biases [1, out]."""
    def linear(k, fan_in, fan_out):
        kw, kb = jax.random.split(k)
        bound = 1.0 / jnp.sqrt(fan_in)
        w = jax.random.uniform(kw, (fan_in, fan_out), jnp.float32, -bound, bound)
        b = jax.random.uniform(kb, (1, fan_out), jnp.float32, -bound, bound)
        return w, b

    keys = jax.random.split(key, 7)
    w1, b1 = linear(keys[0], INPUT_DIM, HIDDEN)          # vae.fc1
    wm, bm = linear(keys[1], HIDDEN, LATENT_DIM)         # vae.fc2_mean
    wlv, blv = linear(keys[2], HIDDEN, LATENT_DIM)       # vae.fc2_logvar
    w3, b3 = linear(keys[3], LATENT_DIM, HIDDEN)         # vae.fc3
    w4, b4 = linear(keys[4], HIDDEN, INPUT_DIM)          # vae.fc4
    wc1, bc1 = linear(keys[5], LATENT_DIM, HIDDEN)       # cnn.fc1
    wc2, bc2 = linear(keys[6], HIDDEN, NUM_CLASSES)      # cnn.fc2
    return (w1, b1, wm, bm, wlv, blv, w3, b3, w4, b4, wc1, bc1, wc2, bc2)


def pack_params(params):
    """Pack the 14 tensors into one weight slab and one bias slab (zeros elsewhere)."""
    (w1, b1, wm, bm, wlv, blv, w3, b3, w4, b4, wc1, bc1, wc2, bc2) = params

    W = jnp.zeros((W_ROWS, W_COLS), jnp.float32)
    W = W.at[W1_R0:W1_R0 + INPUT_DIM, 0:HIDDEN].set(w1)
    W = W.at[WMLV_R0:WMLV_R0 + HIDDEN, 0:LATENT_DIM].set(wm)
    W = W.at[WMLV_R0:WMLV_R0 + HIDDEN, LATENT_DIM:MLV].set(wlv)
    W = W.at[WDC_R0:WDC_R0 + LATENT_DIM, 0:HIDDEN].set(w3)
    W = W.at[WDC_R0:WDC_R0 + LATENT_DIM, HIDDEN:2 * HIDDEN].set(wc1)
    # block-diagonal output head: rows 0..128 (hd part) -> W4, rows 128..256 (hc part) -> Wc2
    W = W.at[WOUT_R0:WOUT_R0 + HIDDEN, 0:INPUT_DIM].set(w4)
    W = W.at[WOUT_R0 + HIDDEN:WOUT_R0 + 2 * HIDDEN, INPUT_DIM:HEADS].set(wc2)

    Bb = jnp.zeros((4, W_COLS), jnp.float32)
    Bb = Bb.at[0, 0:HIDDEN].set(b1[0])
    Bb = Bb.at[1, 0:LATENT_DIM].set(bm[0])
    Bb = Bb.at[1, LATENT_DIM:MLV].set(blv[0])
    Bb = Bb.at[2, 0:HIDDEN].set(b3[0])
    Bb = Bb.at[2, HIDDEN:2 * HIDDEN].set(bc1[0])
    Bb = Bb.at[3, 0:INPUT_DIM].set(b4[0])
    Bb = Bb.at[3, INPUT_DIM:HEADS].set(bc2[0])
    return W, Bb


def reference_forward(x, eps, params):
    (w1, b1, wm, bm, wlv, blv, w3, b3, w4, b4, wc1, bc1, wc2, bc2) = params
    h = jax.nn.relu(x @ w1 + b1)
    mean = h @ wm + bm
    logvar = h @ wlv + blv
    z = mean + eps * jnp.exp(0.5 * logvar)
    hd = jax.nn.relu(z @ w3 + b3)
    xr = jax.nn.sigmoid(hd @ w4 + b4)
    hc = jax.nn.relu(z @ wc1 + bc1)
    logits = hc @ wc2 + bc2
    return xr, mean, logvar, logits


if __name__ == "__main__":
    key = jax.random.PRNGKey(0)
    k_x, k_eps, k_params = jax.random.split(key, 3)

    B = 8
    x = jax.random.normal(k_x, (B, INPUT_DIM), jnp.float32)
    # torch.randn_like(std) in reparameterize -> deterministic eps passed in.
    eps = jax.random.normal(k_eps, (B, LATENT_DIM), jnp.float32)
    params = init_params(k_params)
    w_slab, b_slab = pack_params(params)

    outs = vae_cnn_forward(x, eps, w_slab, b_slab)
    outs = jax.block_until_ready(outs)

    refs = reference_forward(x, eps, params)
    names = ("x_reconstructed", "mean", "logvar", "class_logits")
    for name, o, r in zip(names, outs, refs):
        assert o.shape == r.shape, f"shape mismatch for {name}"
        assert jnp.allclose(o, r, atol=1e-5, rtol=1e-5), f"mismatch vs reference: {name}"

    print("KERNEL_OK")
</pallas_src>

<mosaic_0001>
module attributes {stable_mosaic.version = 11 : i64} {
  func.func @vae_cnn_kernel(%arg0: memref<8x30xf32, #tpu.memory_space<vmem>>, %arg1: memref<8x20xf32, #tpu.memory_space<vmem>>, %arg2: memref<440x256xf32, #tpu.memory_space<vmem>>, %arg3: memref<4x256xf32, #tpu.memory_space<vmem>>, %arg4: memref<8x128xf32, #tpu.memory_space<vmem>>) attributes {dimension_semantics = [], scalar_prefetch = 0 : i64, scratch_operands = 0 : i64, tpu.core_type = #tpu.core_type<tc>} {
    %c0 = arith.constant 0 : index
    %c0_0 = arith.constant 0 : index
    %0 = vector.load %arg0[%c0, %c0_0] : memref<8x30xf32, #tpu.memory_space<vmem>>, vector<8x30xf32>
    %c0_1 = arith.constant 0 : index
    %c0_2 = arith.constant 0 : index
    %1 = vector.load %arg1[%c0_1, %c0_2] : memref<8x20xf32, #tpu.memory_space<vmem>>, vector<8x20xf32>
    %c0_3 = arith.constant 0 : index
    %c0_4 = arith.constant 0 : index
    %2 = vector.load %arg2[%c0_3, %c0_4] : memref<440x256xf32, #tpu.memory_space<vmem>>, vector<30x128xf32>
    %c32 = arith.constant 32 : index
    %c0_5 = arith.constant 0 : index
    %3 = vector.load %arg2[%c32, %c0_5] : memref<440x256xf32, #tpu.memory_space<vmem>>, vector<128x40xf32>
    %c160 = arith.constant 160 : index
    %c0_6 = arith.constant 0 : index
    %4 = vector.load %arg2[%c160, %c0_6] : memref<440x256xf32, #tpu.memory_space<vmem>>, vector<20x256xf32>
    %c184 = arith.constant 184 : index
    %c0_7 = arith.constant 0 : index
    %5 = vector.load %arg2[%c184, %c0_7] : memref<440x256xf32, #tpu.memory_space<vmem>>, vector<256x35xf32>
    %c0_8 = arith.constant 0 : index
    %c0_9 = arith.constant 0 : index
    %6 = vector.load %arg3[%c0_8, %c0_9] : memref<4x256xf32, #tpu.memory_space<vmem>>, vector<1x128xf32>
    %c1 = arith.constant 1 : index
    %c0_10 = arith.constant 0 : index
    %7 = vector.load %arg3[%c1, %c0_10] : memref<4x256xf32, #tpu.memory_space<vmem>>, vector<1x40xf32>
    %c2 = arith.constant 2 : index
    %c0_11 = arith.constant 0 : index
    %8 = vector.load %arg3[%c2, %c0_11] : memref<4x256xf32, #tpu.memory_space<vmem>>, vector<1x256xf32>
    %c3 = arith.constant 3 : index
    %c0_12 = arith.constant 0 : index
    %9 = vector.load %arg3[%c3, %c0_12] : memref<4x256xf32, #tpu.memory_space<vmem>>, vector<1x35xf32>
    %cst = arith.constant dense<0.000000e+00> : vector<8x128xf32>
    %10 = tpu.matmul %0, %2, %cst {dimension_numbers = #tpu.dot_dimension_numbers<[1], [0], [0], [1], [0, 0, 1, 1], [], []>} : vector<8x30xf32>, vector<30x128xf32>, vector<8x128xf32> -> vector<8x128xf32>
    %11 = vector.broadcast %6 : vector<1x128xf32> to vector<8x128xf32>
    %12 = arith.addf %10, %11 : vector<8x128xf32>
    %cst_13 = arith.constant 0.000000e+00 : f32
    %13 = vector.broadcast %cst_13 : f32 to vector<8x128xf32>
    %14 = arith.maximumf %12, %13 : vector<8x128xf32>
    %cst_14 = arith.constant dense<0.000000e+00> : vector<8x40xf32>
    %15 = tpu.matmul %14, %3, %cst_14 {dimension_numbers = #tpu.dot_dimension_numbers<[1], [0], [0], [1], [0, 0, 1, 1], [], []>} : vector<8x128xf32>, vector<128x40xf32>, vector<8x40xf32> -> vector<8x40xf32>
    %16 = vector.broadcast %7 : vector<1x40xf32> to vector<8x40xf32>
    %17 = arith.addf %15, %16 : vector<8x40xf32>
    %18 = vector.extract_strided_slice %17 {offsets = [0, 0], sizes = [8, 20], strides = [1, 1]} : vector<8x40xf32> to vector<8x20xf32>
    %19 = vector.extract_strided_slice %17 {offsets = [0, 20], sizes = [8, 20], strides = [1, 1]} : vector<8x40xf32> to vector<8x20xf32>
    %cst_15 = arith.constant 5.000000e-01 : f32
    %20 = vector.broadcast %cst_15 : f32 to vector<8x20xf32>
    %21 = arith.mulf %20, %19 : vector<8x20xf32>
    %22 = math.exp %21 : vector<8x20xf32>
    %23 = arith.mulf %1, %22 : vector<8x20xf32>
    %24 = arith.addf %18, %23 : vector<8x20xf32>
    %cst_16 = arith.constant dense<0.000000e+00> : vector<8x256xf32>
    %25 = tpu.matmul %24, %4, %cst_16 {dimension_numbers = #tpu.dot_dimension_numbers<[1], [0], [0], [1], [0, 0, 1, 1], [], []>} : vector<8x20xf32>, vector<20x256xf32>, vector<8x256xf32> -> vector<8x256xf32>
    %26 = vector.broadcast %8 : vector<1x256xf32> to vector<8x256xf32>
    %27 = arith.addf %25, %26 : vector<8x256xf32>
    %cst_17 = arith.constant 0.000000e+00 : f32
    %28 = vector.broadcast %cst_17 : f32 to vector<8x256xf32>
    %29 = arith.maximumf %27, %28 : vector<8x256xf32>
    %cst_18 = arith.constant dense<0.000000e+00> : vector<8x35xf32>
    %30 = tpu.matmul %29, %5, %cst_18 {dimension_numbers = #tpu.dot_dimension_numbers<[1], [0], [0], [1], [0, 0, 1, 1], [], []>} : vector<8x256xf32>, vector<256x35xf32>, vector<8x35xf32> -> vector<8x35xf32>
    %31 = vector.broadcast %9 : vector<1x35xf32> to vector<8x35xf32>
    %32 = arith.addf %30, %31 : vector<8x35xf32>
    %33 = tpu.iota {dimensions = array<i32: 1>} : vector<8x35xi32>
    %c30_i32 = arith.constant 30 : i32
    %34 = vector.broadcast %c30_i32 : i32 to vector<8x35xi32>
    %35 = arith.cmpi slt, %33, %34 : vector<8x35xi32>
    %36 = arith.negf %32 : vector<8x35xf32>
    %37 = math.exp %36 : vector<8x35xf32>
    %cst_19 = arith.constant 1.000000e+00 : f32
    %38 = vector.broadcast %cst_19 : f32 to vector<8x35xf32>
    %39 = arith.addf %38, %37 : vector<8x35xf32>
    %40 = arith.divf %38, %39 : vector<8x35xf32>
    %41 = arith.select %35, %40, %32 : vector<8x35xi1>, vector<8x35xf32>
    %cst_20 = arith.constant 0.000000e+00 : f32
    %42 = vector.broadcast %cst_20 : f32 to vector<8x53xf32>
    %43 = tpu.concatenate %41, %17, %42 in 1 : vector<8x35xf32>, vector<8x40xf32>, vector<8x53xf32> -> vector<8x128xf32>
    %c0_21 = arith.constant 0 : index
    %c0_22 = arith.constant 0 : index
    %44 = vector.load %arg4[%c0_21, %c0_22] : memref<8x128xf32, #tpu.memory_space<vmem>>, vector<8x128xf32>
    tpu.vector_store %arg4[%c0_21, %c0_22], %43 {strides = array<i32>} : memref<8x128xf32, #tpu.memory_space<vmem>>, vector<8x128xf32>,
    return
  }
}

</mosaic_0001>

<llo_original>
// kernel: tpu_custom_call.1
$region0: #{tpu_custom_call.1}
  #allocation0 [shape = 'u32[]', space=smem, size = 0x4, offset = 0x4, fixed_abs, tag = 'smem constant byte address 0x4 - core index']
  #allocation1 [shape = 'u32[144,128]{1,0:T(1,128)}', space=vmem, size = 0x12000, scoped, tag = 'internal scratch']
  %s0 = inlined_call_operand.hbm [shape: f32[8,30], index: 0, kind: input, shape index: {}]
  %s1 = inlined_call_operand.hbm [shape: f32[8,20], index: 1, kind: input, shape index: {}]
  %s2 = inlined_call_operand.hbm [shape: f32[440,256], index: 2, kind: input, shape index: {}]
  %s3 = inlined_call_operand.vmem [shape: f32[4,256], index: 3, kind: input, shape index: {}]
  %s4 = inlined_call_operand.hbm [shape: f32[8,128], index: 4, kind: output, shape index: {}]
  %s5 = sld [smem:[#allocation0]]
  $region38: #{tpu_custom_call.1} parent=0
    _
  %s7 = ssub.s32 1, %s5
  %s8 = scalar_select 0, %s7, %s5
  $region1: #{tpu_custom_call.1} parent=0
    #allocation2 [shape = 'u8[4096]{0}', space=vmem, size = 0x1000, scoped, tag = 'input window, operand 0, single buffered']
    #allocation3 [shape = 's32[1]{0}', space=sflag, size = 0x4, scoped, tag = 'scoped memory for tpu_custom_call.1']
    #allocation4 [shape = 's32[1]{0}', space=sflag, size = 0x4, scoped, tag = 'scoped memory for tpu_custom_call.1']
    #allocation5 [shape = 'u8[4096]{0}', space=vmem, size = 0x1000, scoped, tag = 'input window, operand 1, single buffered']
    #allocation6 [shape = 's32[1]{0}', space=sflag, size = 0x4, scoped, tag = 'scoped memory for tpu_custom_call.1']
    #allocation7 [shape = 'u8[450560]{0}', space=vmem, size = 0x6e000, scoped, tag = 'input window, operand 2, single buffered']
    #allocation8 [shape = 'u8[4096]{0}', space=vmem, size = 0x1000, scoped, tag = 'output window, operand 0, single buffered']
    %9 = vsyncpa [#allocation3], 0
    %10 = vsyncpa [#allocation6], 0
    %11 = vsyncpa [#allocation4], 0
    // Predicated region
    $region2: #{tpu_custom_call.1} parent=1 // pred_check
      _
    $region3: #{tpu_custom_call.1} parent=1 // pred_check_branch
      %13 = sbr.rel (0) target = $region5
    $region4: #{tpu_custom_call.1} parent=1 // pred_region
      %s15 = ssub.s32 128, 128
      %16 = vsyncadd [#allocation3], %s15
      %s18 = sshll.u32 [#allocation2], 4
      %s19 = int_to_ptr.vmem [resolvable:$true] %s18
      %21 = dma.hbm_to_vmem [thread:$0]  %s0, 128, %s19, [#allocation3]
    $region5: #{tpu_custom_call.1} parent=1 // pred_fallthru
      _
    // Predicated region
    $region6: #{tpu_custom_call.1} parent=1 // pred_check
      _
    $region7: #{tpu_custom_call.1} parent=1 // pred_check_branch
      %23 = sbr.rel (0) target = $region9
    $region8: #{tpu_custom_call.1} parent=1 // pred_region
      %s25 = ssub.s32 128, 128
      %26 = vsyncadd [#allocation6], %s25
      %s28 = sshll.u32 [#allocation5], 4
      %s29 = int_to_ptr.vmem [resolvable:$true] %s28
      %31 = dma.hbm_to_vmem [thread:$0]  %s1, 128, %s29, [#allocation6]
    $region9: #{tpu_custom_call.1} parent=1 // pred_fallthru
      _
    // Predicated region
    $region10: #{tpu_custom_call.1} parent=1 // pred_check
      _
    $region11: #{tpu_custom_call.1} parent=1 // pred_check_branch
      %33 = sbr.rel (0) target = $region13
    $region12: #{tpu_custom_call.1} parent=1 // pred_region
      %s35 = ssub.s32 14080, 14080
      %36 = vsyncadd [#allocation6], %s35
      %s37 = sshll.u32 [#allocation7], 4
      %s38 = int_to_ptr.vmem [resolvable:$true] %s37
      %43 = dma.hbm_to_vmem [thread:$0]  %s2, 14080, %s38, [#allocation6], 256, 256, 16
    $region13: #{tpu_custom_call.1} parent=1 // pred_fallthru
      _
    // Predicated region
    $region14: #{tpu_custom_call.1} parent=1 // pred_check
      _
    $region15: #{tpu_custom_call.1} parent=1 // pred_check_branch
      %45 = sbr.rel (0) target = $region17
    $region16: #{tpu_custom_call.1} parent=1 // pred_region
      _
    $region17: #{tpu_custom_call.1} parent=1 // pred_fallthru
      _
    // Predicated region
    $region18: #{tpu_custom_call.1} parent=1 // pred_check
      _
    $region19: #{tpu_custom_call.1} parent=1 // pred_check_branch
      %47 = sbr.rel (0) target = $region21
    $region20: #{tpu_custom_call.1} parent=1 // pred_region
      %48 = dma.done [#allocation3], 128
    $region21: #{tpu_custom_call.1} parent=1 // pred_fallthru
      _
    // Predicated region
    $region22: #{tpu_custom_call.1} parent=1 // pred_check
      _
    $region23: #{tpu_custom_call.1} parent=1 // pred_check_branch
      %50 = sbr.rel (0) target = $region25
    $region24: #{tpu_custom_call.1} parent=1 // pred_region
      %51 = dma.done [#allocation6], 128
    $region25: #{tpu_custom_call.1} parent=1 // pred_fallthru
      _
    // Predicated region
    $region26: #{tpu_custom_call.1} parent=1 // pred_check
      _
    $region27: #{tpu_custom_call.1} parent=1 // pred_check_branch
      %53 = sbr.rel (0) target = $region29
    $region28: #{tpu_custom_call.1} parent=1 // pred_region
      %54 = dma.done [#allocation6], 14080
    $region29: #{tpu_custom_call.1} parent=1 // pred_fallthru
      _
    %v55 = vld [vmem:[#allocation2] sm:$0xff]
    %v56 = vld [vmem:[#allocation5] sm:$0xff]
    %v57 = vld [vmem:[#allocation7] sm:$0xff]
    %v58 = vld [vmem:[#allocation7 + $0x10] sm:$0xff]
    %v59 = vld [vmem:[#allocation7 + $0x20] sm:$0xff]
    %v60 = vld [vmem:[#allocation7 + $0x30] sm:$0x3f]
    %v61 = vld [vmem:[#allocation7 + $0x40] sm:$0xff]
    %v62 = vld [vmem:[#allocation7 + $0x50] sm:$0xff]
    %v63 = vld [vmem:[#allocation7 + $0x60] sm:$0xff]
    %v64 = vld [vmem:[#allocation7 + $0x70] sm:$0xff]
    %v65 = vld [vmem:[#allocation7 + $0x80] sm:$0xff]
    %v66 = vld [vmem:[#allocation7 + $0x90] sm:$0xff]
    %v67 = vld [vmem:[#allocation7 + $0xa0] sm:$0xff]
    %v68 = vld [vmem:[#allocation7 + $0xb0] sm:$0xff]
    %v69 = vld [vmem:[#allocation7 + $0xc0] sm:$0xff]
    %v70 = vld [vmem:[#allocation7 + $0xd0] sm:$0xff]
    %v71 = vld [vmem:[#allocation7 + $0xe0] sm:$0xff]
    %v72 = vld [vmem:[#allocation7 + $0xf0] sm:$0xff]
    %v73 = vld [vmem:[#allocation7 + $0x100] sm:$0xff]
    %v74 = vld [vmem:[#allocation7 + $0x110] sm:$0xff]
    %v75 = vld [vmem:[#allocation7 + $0x120] sm:$0xff]
    %v76 = vld [vmem:[#allocation7 + $0x130] sm:$0xff]
    %v77 = vld [vmem:[#allocation7 + $0x140] sm:$0xff]
    %v78 = vld [vmem:[#allocation7 + $0x148] sm:$0xff]
    %v79 = vld [vmem:[#allocation7 + $0x150] sm:$0xff]
    %v80 = vld [vmem:[#allocation7 + $0x158] sm:$0xff]
    %v81 = vld [vmem:[#allocation7 + $0x160] sm:$0xf]
    %v82 = vld [vmem:[#allocation7 + $0x168] sm:$0xf]
    %v83 = vld [vmem:[#allocation7 + $0x170] sm:$0xff]
    %v84 = vld [vmem:[#allocation7 + $0x180] sm:$0xff]
    %v85 = vld [vmem:[#allocation7 + $0x190] sm:$0xff]
    %v86 = vld [vmem:[#allocation7 + $0x1a0] sm:$0xff]
    %v87 = vld [vmem:[#allocation7 + $0x1b0] sm:$0xff]
    %v88 = vld [vmem:[#allocation7 + $0x1c0] sm:$0xff]
    %v89 = vld [vmem:[#allocation7 + $0x1d0] sm:$0xff]
    %v90 = vld [vmem:[#allocation7 + $0x1e0] sm:$0xff]
    %v91 = vld [vmem:[#allocation7 + $0x1f0] sm:$0xff]
    %v92 = vld [vmem:[#allocation7 + $0x200] sm:$0xff]
    %v93 = vld [vmem:[#allocation7 + $0x210] sm:$0xff]
    %v94 = vld [vmem:[#allocation7 + $0x220] sm:$0xff]
    %v95 = vld [vmem:[#allocation7 + $0x230] sm:$0xff]
    %v96 = vld [vmem:[#allocation7 + $0x240] sm:$0xff]
    %v97 = vld [vmem:[#allocation7 + $0x250] sm:$0xff]
    %v98 = vld [vmem:[#allocation7 + $0x260] sm:$0xff]
    %v99 = vld [vmem:[#allocation7 + $0x270] sm:$0xff]
    %v100 = vld [vmem:[#allocation7 + $0x280] sm:$0xff]
    %v101 = vld [vmem:[#allocation7 + $0x290] sm:$0xff]
    %v102 = vld [vmem:[#allocation7 + $0x2a0] sm:$0xff]
    %v103 = vld [vmem:[#allocation7 + $0x2b0] sm:$0xff]
    %v104 = vld [vmem:[#allocation7 + $0x2c0] sm:$0xff]
    %v105 = vld [vmem:[#allocation7 + $0x2d0] sm:$0xff]
    %v106 = vld [vmem:[#allocation7 + $0x2e0] sm:$0xff]
    %v107 = vld [vmem:[#allocation7 + $0x2f0] sm:$0xff]
    %v108 = vld [vmem:[#allocation7 + $0x300] sm:$0xff]
    %v109 = vld [vmem:[#allocation7 + $0x310] sm:$0xff]
    %v110 = vld [vmem:[#allocation7 + $0x320] sm:$0xff]
    %v111 = vld [vmem:[#allocation7 + $0x330] sm:$0xff]
    %v112 = vld [vmem:[#allocation7 + $0x340] sm:$0xff]
    %v113 = vld [vmem:[#allocation7 + $0x350] sm:$0xff]
    %v114 = vld [vmem:[#allocation7 + $0x360] sm:$0xff]
    %v115 = vld [vmem:[%s3] sm:$0x1]
    %v116 = vld [vmem:[%s3 + $0x1] sm:$0x1]
    %s117 = scalar_lea.vmem %s3, 2
    %v118 = vld [vmem:[%s117] ss:$4 sm:$0x3]
    %v119 = vld [vmem:[%s3 + $0x3] sm:$0x1]
    %v120 = vlaneseq
    %v121 = vshrl.u32 %v120, 7
    %v122 = vsub.s32 0, %v121
    %v123 = vrot.slane %v115, %v122
    %vm124 = vcmask 244736
    %v126 = vsel %vm124, %v55, 0
    %vm128 = vcmask 1045504
    %v130 = vsel %vm128, %v60, 0
    %132 = vmatprep.subr.mxu0 0.0
    %133 = vmatpush1.msra.mxu0 %v57
    %134 = vmatprep.subr.mxu0 0.0
    %135 = vmatpush1.msra.mxu0 %v58
    %136 = vmatprep.subr.mxu0 0.0
    %137 = vmatpush1.msra.mxu0 %v59
    %138 = vmatprep.subr.mxu0 0.0
    %139 = vmatpush1.msra.mxu0 %v130
    %140 = vmatprep.subr.mxu0 0.0
    %141 = vmatpush1.msra.mxu0 0.0
    %142 = vmatprep.subr.mxu0 0.0
    %143 = vmatpush1.msra.mxu0 0.0
    %144 = vmatprep.subr.mxu0 0.0
    %145 = vmatpush1.msra.mxu0 0.0
    %146 = vmatprep.subr.mxu0 0.0
    %147 = vmatpush1.msra.mxu0 0.0
    %148 = vmatprep.subr.mxu0 0.0
    %149 = vmatpush1.msra.mxu0 0.0
    %150 = vmatprep.subr.mxu0 0.0
    %151 = vmatpush1.msra.mxu0 0.0
    %152 = vmatprep.subr.mxu0 0.0
    %153 = vmatpush1.msra.mxu0 0.0
    %154 = vmatprep.subr.mxu0 0.0
    %155 = vmatpush1.msra.mxu0 0.0
    %156 = vmatprep.subr.mxu0 0.0
    %157 = vmatpush1.msra.mxu0 0.0
    %158 = vmatprep.subr.mxu0 0.0
    %159 = vmatpush1.msra.mxu0 0.0
    %160 = vmatprep.subr.mxu0 0.0
    %161 = vmatpush1.msra.mxu0 0.0
    %162 = vmatprep.subr.mxu0 0.0
    %163 = vmatpush1.msra.mxu0 0.0
    %164 = vmatprep.subr.mxu0 0.0
    %165 = vmatpush1.msra.mxu0 0.0
    %166 = vmatprep.subr.mxu0 0.0
    %167 = vmatpush1.msra.mxu0 0.0
    %168 = vmatprep.subr.mxu0 0.0
    %169 = vmatpush1.msra.mxu0 0.0
    %170 = vmatprep.subr.mxu0 0.0
    %171 = vmatpush1.msra.mxu0 0.0
    %172 = vmatprep.subr.mxu0 0.0
    %173 = vmatpush1.msra.mxu0 0.0
    %174 = vmatprep.subr.mxu0 0.0
    %175 = vmatpush1.msra.mxu0 0.0
    %176 = vmatprep.subr.mxu0 0.0
    %177 = vmatpush1.msra.mxu0 0.0
    %178 = vmatprep.subr.mxu0 0.0
    %179 = vmatpush1.msra.mxu0 0.0
    %180 = vmatprep.subr.mxu0 0.0
    %181 = vmatpush1.msra.mxu0 0.0
    %182 = vmatprep.subr.mxu0 0.0
    %183 = vmatpush1.msra.mxu0 0.0
    %184 = vmatprep.subr.mxu0 0.0
    %185 = vmatpush1.msra.mxu0 0.0
    %186 = vmatprep.subr.mxu0 0.0
    %187 = vmatpush1.msra.mxu0 0.0
    %188 = vmatprep.subr.mxu0 0.0
    %189 = vmatpush1.msra.mxu0 0.0
    %190 = vmatprep.subr.mxu0 0.0
    %191 = vmatpush1.msra.mxu0 0.0
    %192 = vmatprep.subr.mxu0 0.0
    %193 = vmatpush1.msra.mxu0 0.0
    %194 = vmatprep.subr.mxu0 0.0
    %195 = vmatpush1.msra.mxu0 0.0
    %196 = vmatprep.mubr.f32.mxu0 0.0
    %197 = vmatmul.mubr.f32.gmra.mrb[0].mxu0 %v126
    %v198 = vpop.f32.mrb[0].mxu0
    %v199 = vadd.f32 %v123, %v198
    %v200 = vpop.f32.mrb[0].mxu0
    %201 = vdwg.mxu0
    %v202 = vmax.f32 %v199, 0.0
    %v203 = vlaneseq
    %v204 = vshrl.u32 %v203, 7
    %v205 = vsub.s32 0, %v204
    %v206 = vrot.slane %v116, %v205
    %207 = vmatprep.subr.mxu0 0.0
    %208 = vmatpush1.msra.mxu0 %v61
    %209 = vmatprep.subr.mxu0 0.0
    %210 = vmatpush1.msra.mxu0 %v62
    %211 = vmatprep.subr.mxu0 0.0
    %212 = vmatpush1.msra.mxu0 %v63
    %213 = vmatprep.subr.mxu0 0.0
    %214 = vmatpush1.msra.mxu0 %v64
    %215 = vmatprep.subr.mxu0 0.0
    %216 = vmatpush1.msra.mxu0 %v65
    %217 = vmatprep.subr.mxu0 0.0
    %218 = vmatpush1.msra.mxu0 %v66
    %219 = vmatprep.subr.mxu0 0.0
    %220 = vmatpush1.msra.mxu0 %v67
    %221 = vmatprep.subr.mxu0 0.0
    %222 = vmatpush1.msra.mxu0 %v68
    %223 = vmatprep.subr.mxu0 0.0
    %224 = vmatpush1.msra.mxu0 %v69
    %225 = vmatprep.subr.mxu0 0.0
    %226 = vmatpush1.msra.mxu0 %v70
    %227 = vmatprep.subr.mxu0 0.0
    %228 = vmatpush1.msra.mxu0 %v71
    %229 = vmatprep.subr.mxu0 0.0
    %230 = vmatpush1.msra.mxu0 %v72
    %231 = vmatprep.subr.mxu0 0.0
    %232 = vmatpush1.msra.mxu0 %v73
    %233 = vmatprep.subr.mxu0 0.0
    %234 = vmatpush1.msra.mxu0 %v74
    %235 = vmatprep.subr.mxu0 0.0
    %236 = vmatpush1.msra.mxu0 %v75
    %237 = vmatprep.subr.mxu0 0.0
    %238 = vmatpush1.msra.mxu0 %v76
    %239 = vmatprep.subr.mxu0 0.0
    %240 = vmatpush1.msra.mxu0 0.0
    %241 = vmatprep.subr.mxu0 0.0
    %242 = vmatpush1.msra.mxu0 0.0
    %243 = vmatprep.subr.mxu0 0.0
    %244 = vmatpush1.msra.mxu0 0.0
    %245 = vmatprep.subr.mxu0 0.0
    %246 = vmatpush1.msra.mxu0 0.0
    %247 = vmatprep.subr.mxu0 0.0
    %248 = vmatpush1.msra.mxu0 0.0
    %249 = vmatprep.subr.mxu0 0.0
    %250 = vmatpush1.msra.mxu0 0.0
    %251 = vmatprep.subr.mxu0 0.0
    %252 = vmatpush1.msra.mxu0 0.0
    %253 = vmatprep.subr.mxu0 0.0
    %254 = vmatpush1.msra.mxu0 0.0
    %255 = vmatprep.subr.mxu0 0.0
    %256 = vmatpush1.msra.mxu0 0.0
    %257 = vmatprep.subr.mxu0 0.0
    %258 = vmatpush1.msra.mxu0 0.0
    %259 = vmatprep.subr.mxu0 0.0
    %260 = vmatpush1.msra.mxu0 0.0
    %261 = vmatprep.subr.mxu0 0.0
    %262 = vmatpush1.msra.mxu0 0.0
    %263 = vmatprep.subr.mxu0 0.0
    %264 = vmatpush1.msra.mxu0 0.0
    %265 = vmatprep.subr.mxu0 0.0
    %266 = vmatpush1.msra.mxu0 0.0
    %267 = vmatprep.subr.mxu0 0.0
    %268 = vmatpush1.msra.mxu0 0.0
    %269 = vmatprep.subr.mxu0 0.0
    %270 = vmatpush1.msra.mxu0 0.0
    %271 = vmatprep.mubr.f32.mxu0 0.0
    %272 = vmatmul.mubr.f32.gmra.mrb[0].mxu0 %v202
    %v273 = vpop.f32.mrb[0].mxu0
    %v274 = vadd.f32 %v206, %v273
    %v275 = vpop.f32.mrb[0].mxu0
    %276 = vdwg.mxu0
    %v277 = vmul.f32 %v274, 0.5
    %v278 = vmul.f32 %v277, 1.442695
    %v279 = vpow.pop %v278
    %281 = vrot.lane.b32.xlu0 %v279, 108
    %v282 = vpop.permute.xlu0 %281
    %v284 = vmul.f32 %v56, %v282
    %v285 = vadd.f32 %v274, %v284
    %v287 = vlaneseq
    %v288 = vshrl.u32 %v287, 7
    %v289 = vsub.s32 0, %v288
    %v290 = vrot.slane %v118, %v289
    %v291 = vlaneseq
    %v292 = vshrl.u32 %v291, 7
    %v293 = vsub.s32 1, %v292
    %v294 = vrot.slane %v118, %v293
    %vm297 = vcmask 162816
    %v299 = vsel %vm297, %v285, 0
    %vm301 = vcmask 1043456
    %v303 = vsel %vm301, %v81, 0
    %v306 = vsel %vm301, %v82, 0
    %308 = vmatprep.subr.mxu0 %v78
    %309 = vmatpush1.msra.mxu0 %v77
    %310 = vmatprep.subr.mxu0 %v80
    %311 = vmatpush1.msra.mxu0 %v79
    %312 = vmatprep.subr.mxu0 %v306
    %313 = vmatpush1.msra.mxu0 %v303
    %314 = vmatprep.subr.mxu0 0.0
    %315 = vmatpush1.msra.mxu0 0.0
    %316 = vmatprep.subr.mxu0 0.0
    %317 = vmatpush1.msra.mxu0 0.0
    %318 = vmatprep.subr.mxu0 0.0
    %319 = vmatpush1.msra.mxu0 0.0
    %320 = vmatprep.subr.mxu0 0.0
    %321 = vmatpush1.msra.mxu0 0.0
    %322 = vmatprep.subr.mxu0 0.0
    %323 = vmatpush1.msra.mxu0 0.0
    %324 = vmatprep.subr.mxu0 0.0
    %325 = vmatpush1.msra.mxu0 0.0
    %326 = vmatprep.subr.mxu0 0.0
    %327 = vmatpush1.msra.mxu0 0.0
    %328 = vmatprep.subr.mxu0 0.0
    %329 = vmatpush1.msra.mxu0 0.0
    %330 = vmatprep.subr.mxu0 0.0
    %331 = vmatpush1.msra.mxu0 0.0
    %332 = vmatprep.subr.mxu0 0.0
    %333 = vmatpush1.msra.mxu0 0.0
    %334 = vmatprep.subr.mxu0 0.0
    %335 = vmatpush1.msra.mxu0 0.0
    %336 = vmatprep.subr.mxu0 0.0
    %337 = vmatpush1.msra.mxu0 0.0
    %338 = vmatprep.subr.mxu0 0.0
    %339 = vmatpush1.msra.mxu0 0.0
    %340 = vmatprep.subr.mxu0 0.0
    %341 = vmatpush1.msra.mxu0 0.0
    %342 = vmatprep.subr.mxu0 0.0
    %343 = vmatpush1.msra.mxu0 0.0
    %344 = vmatprep.subr.mxu0 0.0
    %345 = vmatpush1.msra.mxu0 0.0
    %346 = vmatprep.subr.mxu0 0.0
    %347 = vmatpush1.msra.mxu0 0.0
    %348 = vmatprep.subr.mxu0 0.0
    %349 = vmatpush1.msra.mxu0 0.0
    %350 = vmatprep.subr.mxu0 0.0
    %351 = vmatpush1.msra.mxu0 0.0
    %352 = vmatprep.subr.mxu0 0.0
    %353 = vmatpush1.msra.mxu0 0.0
    %354 = vmatprep.subr.mxu0 0.0
    %355 = vmatpush1.msra.mxu0 0.0
    %356 = vmatprep.subr.mxu0 0.0
    %357 = vmatpush1.msra.mxu0 0.0
    %358 = vmatprep.subr.mxu0 0.0
    %359 = vmatpush1.msra.mxu0 0.0
    %360 = vmatprep.subr.mxu0 0.0
    %361 = vmatpush1.msra.mxu0 0.0
    %362 = vmatprep.subr.mxu0 0.0
    %363 = vmatpush1.msra.mxu0 0.0
    %364 = vmatprep.subr.mxu0 0.0
    %365 = vmatpush1.msra.mxu0 0.0
    %366 = vmatprep.subr.mxu0 0.0
    %367 = vmatpush1.msra.mxu0 0.0
    %368 = vmatprep.subr.mxu0 0.0
    %369 = vmatpush1.msra.mxu0 0.0
    %370 = vmatprep.subr.mxu0 0.0
    %371 = vmatpush1.msra.mxu0 0.0
    %372 = vmatprep.mubr.f32.mxu0 0.0
    %373 = vmatmul.mubr.f32.gmra.mrb[0].mxu0 %v299
    %v374 = vpop.f32.mrb[0].mxu0
    %v375 = vadd.f32 %v290, %v374
    %v376 = vpop.f32.mrb[0].mxu0
    %v377 = vadd.f32 %v294, %v376
    %378 = vdwg.mxu0
    %v379 = vmax.f32 %v375, 0.0
    %v380 = vmax.f32 %v377, 0.0
    %v381 = vlaneseq
    %v382 = vshrl.u32 %v381, 7
    %v383 = vsub.s32 0, %v382
    %v384 = vrot.slane %v119, %v383
    %385 = vmatprep.subr.mxu0 0.0
    %386 = vmatpush1.msra.mxu0 %v83
    %387 = vmatprep.subr.mxu0 0.0
    %388 = vmatpush1.msra.mxu0 %v84
    %389 = vmatprep.subr.mxu0 0.0
    %390 = vmatpush1.msra.mxu0 %v85
    %391 = vmatprep.subr.mxu0 0.0
    %392 = vmatpush1.msra.mxu0 %v86
    %393 = vmatprep.subr.mxu0 0.0
    %394 = vmatpush1.msra.mxu0 %v87
    %395 = vmatprep.subr.mxu0 0.0
    %396 = vmatpush1.msra.mxu0 %v88
    %397 = vmatprep.subr.mxu0 0.0
    %398 = vmatpush1.msra.mxu0 %v89
    %399 = vmatprep.subr.mxu0 0.0
    %400 = vmatpush1.msra.mxu0 %v90
    %401 = vmatprep.subr.mxu0 0.0
    %402 = vmatpush1.msra.mxu0 %v91
    %403 = vmatprep.subr.mxu0 0.0
    %404 = vmatpush1.msra.mxu0 %v92
    %405 = vmatprep.subr.mxu0 0.0
    %406 = vmatpush1.msra.mxu0 %v93
    %407 = vmatprep.subr.mxu0 0.0
    %408 = vmatpush1.msra.mxu0 %v94
    %409 = vmatprep.subr.mxu0 0.0
    %410 = vmatpush1.msra.mxu0 %v95
    %411 = vmatprep.subr.mxu0 0.0
    %412 = vmatpush1.msra.mxu0 %v96
    %413 = vmatprep.subr.mxu0 0.0
    %414 = vmatpush1.msra.mxu0 %v97
    %415 = vmatprep.subr.mxu0 0.0
    %416 = vmatpush1.msra.mxu0 %v98
    %417 = vmatprep.subr.mxu0 0.0
    %418 = vmatpush1.msra.mxu0 %v99
    %419 = vmatprep.subr.mxu0 0.0
    %420 = vmatpush1.msra.mxu0 %v100
    %421 = vmatprep.subr.mxu0 0.0
    %422 = vmatpush1.msra.mxu0 %v101
    %423 = vmatprep.subr.mxu0 0.0
    %424 = vmatpush1.msra.mxu0 %v102
    %425 = vmatprep.subr.mxu0 0.0
    %426 = vmatpush1.msra.mxu0 %v103
    %427 = vmatprep.subr.mxu0 0.0
    %428 = vmatpush1.msra.mxu0 %v104
    %429 = vmatprep.subr.mxu0 0.0
    %430 = vmatpush1.msra.mxu0 %v105
    %431 = vmatprep.subr.mxu0 0.0
    %432 = vmatpush1.msra.mxu0 %v106
    %433 = vmatprep.subr.mxu0 0.0
    %434 = vmatpush1.msra.mxu0 %v107
    %435 = vmatprep.subr.mxu0 0.0
    %436 = vmatpush1.msra.mxu0 %v108
    %437 = vmatprep.subr.mxu0 0.0
    %438 = vmatpush1.msra.mxu0 %v109
    %439 = vmatprep.subr.mxu0 0.0
    %440 = vmatpush1.msra.mxu0 %v110
    %441 = vmatprep.subr.mxu0 0.0
    %442 = vmatpush1.msra.mxu0 %v111
    %443 = vmatprep.subr.mxu0 0.0
    %444 = vmatpush1.msra.mxu0 %v112
    %445 = vmatprep.subr.mxu0 0.0
    %446 = vmatpush1.msra.mxu0 %v113
    %447 = vmatprep.subr.mxu0 0.0
    %448 = vmatpush1.msra.mxu0 %v114
    %449 = vmatprep.mubr.f32.mxu0 %v380
    %450 = vmatmul.mubr.f32.gmra.mrb[0].mxu0 %v379
    %v451 = vpop.f32.mrb[0].mxu0
    %v452 = vadd.f32 %v384, %v451
    %v453 = vpop.f32.mrb[0].mxu0
    %454 = vdwg.mxu0
    %v455 = vlaneseq
    %v456 = vand.u32 %v455, 127
    %vm457 = vcmp.lt.s32.totalorder %v456, 30
    %v458 = vxor.u32 %v452, 2147483648
    %v459 = vmul.f32 %v458, 1.442695
    %v460 = vpow.pop %v459
    %v461 = vadd.f32 %v460, 1.0
    %v462 = vrcp.pop %v461
    %v463 = vmul.f32 1.0, %v462
    %v464 = vsel %vm457, %v463, %v452
    %466 = vrot.lane.b32.xlu0 %v274, 35
    %v467 = vpop.permute.xlu0 %466
    %vm469 = vcmask 285696
    %v470 = vsel %vm469, %v464, %v467
    %vm471 = vcmask 613376
    %v472 = vsel %vm471, %v470, 0.0
    %473 = vst [vmem:[#allocation8] sm:$0xff] %v472
    // Predicated region
    $region30: #{tpu_custom_call.1} parent=1 // pred_check
      _
    $region31: #{tpu_custom_call.1} parent=1 // pred_check_branch
      %475 = sbr.rel (0) target = $region33
    $region32: #{tpu_custom_call.1} parent=1 // pred_region
      %s477 = ssub.s32 128, 128
      %478 = vsyncadd [#allocation4], %s477
      %s480 = sshll.u32 [#allocation8], 4
      %s481 = int_to_ptr.vmem [resolvable:$true] %s480
      %483 = dma.vmem_to_hbm [thread:$0]  %s481, 128, %s4, [#allocation4]
    $region33: #{tpu_custom_call.1} parent=1 // pred_fallthru
      _
    // Predicated region
    $region34: #{tpu_custom_call.1} parent=1 // pred_check
      _
    $region35: #{tpu_custom_call.1} parent=1 // pred_check_branch
      %485 = sbr.rel (0) target = $region37
    $region36: #{tpu_custom_call.1} parent=1 // pred_region
      %486 = dma.done [#allocation4], 128
    $region37: #{tpu_custom_call.1} parent=1 // pred_fallthru
      _
    %487 = vsyncpa [#allocation3], 1
    %488 = vsyncpa [#allocation6], 1
    %489 = vsyncpa [#allocation4], 1

</llo_original>
